<compile_context>
chip_gen: v6e
topology: v6e:2x2x1
jax: 0.10.0
libtpu: 0.0.40
codegen_flags: <defaults>
</compile_context>

<pallas_src>
import functools

import jax
import jax.numpy as jnp
from jax.experimental import pallas as pl
from jax.experimental.pallas import tpu as pltpu

_LANE = 128


def _round_up(x, m):
    return (x + m - 1) // m * m


def _mdn_fused_kernel(x_ref, w_ref, b_ref, out_ref, *, go_pad):
    """One fused (TILE_N, D) @ (D, W_fused) matmul + per-head epilogues.

    Fused column layout: [ mu : go_pad | sigma : go_pad | pi : 128-pad ].
    """
    # Single MXU pass over all three heads (bf16 operands, f32 accumulate).
    y = jnp.dot(x_ref[...], w_ref[...], preferred_element_type=jnp.float32)
    y = y + b_ref[...]  # f32 epilogue (v5e has no bf16 VPU/EUP)

    # mu head: plain linear (lane-aligned 128-wide store).
    out_ref[:, 0:go_pad] = y[:, 0:go_pad]

    # sigma head: exp(linear) on the EUP.
    out_ref[:, go_pad:2 * go_pad] = jnp.exp(y[:, go_pad:2 * go_pad])

    # pi head: softmax over the gaussian axis.  Padding lanes of this segment
    # carry bias = -1e30 (set in the wrapper), so exp() maps them to 0 and
    # they do not perturb the max / sum.
    logits = y[:, 2 * go_pad:]
    m = jnp.max(logits, axis=-1, keepdims=True)
    e = jnp.exp(logits - m)
    denom = jnp.sum(e, axis=-1, keepdims=True)
    out_ref[:, 2 * go_pad:] = e * pl.reciprocal(denom, approx=True)


@functools.partial(
    jax.jit,
    static_argnames=("n_gaussians", "output_size", "tile_n", "matmul_dtype"))
def mdn_forward(x, w_pi, b_pi, w_mu, b_mu, w_sig, b_sig, *,
                n_gaussians, output_size, tile_n=1024,
                matmul_dtype=jnp.bfloat16):
    """x: (1, N, D) or (N, D).  Weights are (D_in, D_out).  Returns (pi, mu, sigma)."""
    if x.ndim == 3:
        x = x[0]  # squeeze(0)
    N, D = x.shape
    G, O = n_gaussians, output_size
    GO = G * O
    go_pad = _round_up(GO, _LANE)          # mu / sigma segment width
    g_pad = _round_up(G, _LANE)            # pi segment width (lane-dense)
    w_total = 2 * go_pad + g_pad

    # --- fused, lane-aligned weight slab [W_mu | W_sig | W_pi] (zero padded) ---
    w_fused = jnp.zeros((D, w_total), jnp.float32)
    w_fused = w_fused.at[:, 0:GO].set(w_mu)
    w_fused = w_fused.at[:, go_pad:go_pad + GO].set(w_sig)
    w_fused = w_fused.at[:, 2 * go_pad:2 * go_pad + G].set(w_pi)

    # Fused bias; pi padding lanes get -1e30 so softmax ignores them.
    b_fused = jnp.zeros((1, w_total), jnp.float32)
    b_fused = b_fused.at[:, 2 * go_pad:].set(-1e30)
    b_fused = b_fused.at[:, 0:GO].set(jnp.reshape(b_mu, (1, GO)))
    b_fused = b_fused.at[:, go_pad:go_pad + GO].set(jnp.reshape(b_sig, (1, GO)))
    b_fused = b_fused.at[:, 2 * go_pad:2 * go_pad + G].set(jnp.reshape(b_pi, (1, G)))

    # --- tile over N (pad rows so every block is sublane-aligned) ---
    tn = min(tile_n, _round_up(N, 8))      # TILE_N <= 1024 fits v7x 64 MiB VMEM easily
    n_pad = _round_up(N, tn)
    if n_pad != N:
        x = jnp.pad(x, ((0, n_pad - N), (0, 0)))

    # bf16 matmul operands (full-rate MXU on v6e/v7x, half the DMA bytes);
    # accumulation and the whole epilogue stay in f32.
    x_mm = x.astype(matmul_dtype)
    w_mm = w_fused.astype(matmul_dtype)

    grid = (n_pad // tn,)
    kernel = functools.partial(_mdn_fused_kernel, go_pad=go_pad)

    out = pl.pallas_call(
        kernel,
        out_shape=jax.ShapeDtypeStruct((n_pad, w_total), jnp.float32),
        grid=grid,
        in_specs=[
            pl.BlockSpec((tn, D), lambda i: (i, 0)),        # x tile (pipelined)
            pl.BlockSpec((D, w_total), lambda i: (0, 0)),   # fused weights (resident)
            pl.BlockSpec((1, w_total), lambda i: (0, 0)),   # fused bias (resident)
        ],
        out_specs=pl.BlockSpec((tn, w_total), lambda i: (i, 0)),
        compiler_params=pltpu.CompilerParams(
            # N-tiles are independent: shard across the 2 TCs on v7x,
            # neutral on v5e/v6e.
            dimension_semantics=("parallel",)),
    )(x_mm, w_mm, b_fused)

    # Slice the lane-dense fused output back into the three heads.
    mu = out[:N, 0:GO].reshape(N, G, O)
    sigma = out[:N, go_pad:go_pad + GO].reshape(N, G, O)
    pi = out[:N, 2 * go_pad:2 * go_pad + G]
    return pi, mu, sigma


def _init_linear(key, d_in, d_out):
    """Deterministic PyTorch-style uniform(-1/sqrt(d_in), 1/sqrt(d_in)) init.
    Weight is stored transposed (d_in, d_out) for the kernel layout."""
    kw, kb = jax.random.split(key)
    bound = 1.0 / (d_in ** 0.5)
    w = jax.random.uniform(kw, (d_in, d_out), jnp.float32, -bound, bound)
    b = jax.random.uniform(kb, (1, d_out), jnp.float32, -bound, bound)
    return w, b


if __name__ == "__main__":
    # config.output_size = 32 (== input_size of MDN), config.n_gaussians = 4
    D = 32          # input_size == output_size
    G = 4           # n_gaussians
    N = 8           # number of rows after squeeze(0)

    key = jax.random.PRNGKey(0)
    k_x, k_pi, k_mu, k_sig = jax.random.split(key, 4)

    x = jax.random.normal(k_x, (1, N, D), jnp.float32)   # (1, N, D) like the torch input
    w_pi, b_pi = _init_linear(k_pi, D, G)
    w_mu, b_mu = _init_linear(k_mu, D, G * D)
    w_sig, b_sig = _init_linear(k_sig, D, G * D)

    pi, mu, sigma = mdn_forward(x, w_pi, b_pi, w_mu, b_mu, w_sig, b_sig,
                                n_gaussians=G, output_size=D)
    jax.block_until_ready((pi, mu, sigma))

    assert pi.shape == (N, G) and mu.shape == (N, G, D) and sigma.shape == (N, G, D)

    # Reference 1: same bf16 matmul (f32 accumulate) the kernel performs.
    x2 = x[0]
    xb = x2.astype(jnp.bfloat16)

    def lin(w, b):
        return jnp.dot(xb, w.astype(jnp.bfloat16),
                       preferred_element_type=jnp.float32) + b

    ref_pi = jax.nn.softmax(lin(w_pi, b_pi), axis=1)
    ref_mu = lin(w_mu, b_mu).reshape(N, G, D)
    ref_sigma = jnp.exp(lin(w_sig, b_sig)).reshape(N, G, D)
    assert jnp.allclose(pi, ref_pi, atol=5e-3)                 # approx reciprocal
    assert jnp.allclose(mu, ref_mu, atol=1e-4, rtol=1e-4)
    assert jnp.allclose(sigma, ref_sigma, atol=1e-3, rtol=1e-3)

    # Reference 2: loose sanity check against the pure-f32 PyTorch math
    # (bf16 matmul inputs give ~1e-2-level deviations).
    f_pi = jax.nn.softmax(x2 @ w_pi + b_pi, axis=1)
    f_mu = (x2 @ w_mu + b_mu).reshape(N, G, D)
    f_sigma = jnp.exp(x2 @ w_sig + b_sig).reshape(N, G, D)
    assert jnp.allclose(pi, f_pi, atol=5e-2, rtol=5e-2)
    assert jnp.allclose(mu, f_mu, atol=5e-2, rtol=5e-2)
    assert jnp.allclose(sigma, f_sigma, atol=5e-2, rtol=5e-2)

    print("KERNEL_OK")
</pallas_src>

<mosaic_0001>
module attributes {stable_mosaic.version = 11 : i64} {
  func.func @_mdn_fused_kernel(%arg0: i32, %arg1: memref<8x32xbf16, #tpu.memory_space<vmem>>, %arg2: memref<32x384xbf16, #tpu.memory_space<vmem>>, %arg3: memref<1x384xf32, #tpu.memory_space<vmem>>, %arg4: memref<8x384xf32, #tpu.memory_space<vmem>>) attributes {dimension_semantics = [#tpu.dimension_semantics<parallel>], iteration_bounds = array<i64: 1>, scalar_prefetch = 0 : i64, scratch_operands = 0 : i64, tpu.core_type = #tpu.core_type<tc>, window_params = [{transform_indices = @transform_0, window_bounds = array<i64: 8, 32>}, {pipeline_mode = #tpu.pipeline_mode<synchronous>, transform_indices = @transform_1, window_bounds = array<i64: 32, 384>}, {pipeline_mode = #tpu.pipeline_mode<synchronous>, transform_indices = @transform_2, window_bounds = array<i64: 1, 384>}, {transform_indices = @transform_3, window_bounds = array<i64: 8, 384>}]} {
    %c0 = arith.constant 0 : index
    %c0_0 = arith.constant 0 : index
    %0 = vector.load %arg1[%c0, %c0_0] : memref<8x32xbf16, #tpu.memory_space<vmem>>, vector<8x32xbf16>
    %c0_1 = arith.constant 0 : index
    %c0_2 = arith.constant 0 : index
    %1 = vector.load %arg2[%c0_1, %c0_2] : memref<32x384xbf16, #tpu.memory_space<vmem>>, vector<32x384xbf16>
    %cst = arith.constant dense<0.000000e+00> : vector<8x384xf32>
    %2 = tpu.matmul %0, %1, %cst {dimension_numbers = #tpu.dot_dimension_numbers<[1], [0], [0], [1], [0, 0, 1, 1], [], []>} : vector<8x32xbf16>, vector<32x384xbf16>, vector<8x384xf32> -> vector<8x384xf32>
    %c0_3 = arith.constant 0 : index
    %c0_4 = arith.constant 0 : index
    %3 = vector.load %arg3[%c0_3, %c0_4] : memref<1x384xf32, #tpu.memory_space<vmem>>, vector<1x384xf32>
    %4 = vector.broadcast %3 : vector<1x384xf32> to vector<8x384xf32>
    %5 = arith.addf %2, %4 : vector<8x384xf32>
    %6 = vector.extract_strided_slice %5 {offsets = [0, 0], sizes = [8, 128], strides = [1, 1]} : vector<8x384xf32> to vector<8x128xf32>
    %c0_5 = arith.constant 0 : index
    %c0_6 = arith.constant 0 : index
    %7 = vector.load %arg4[%c0_5, %c0_6] : memref<8x384xf32, #tpu.memory_space<vmem>>, vector<8x128xf32>
    tpu.vector_store %arg4[%c0_5, %c0_6], %6 {strides = array<i32>} : memref<8x384xf32, #tpu.memory_space<vmem>>, vector<8x128xf32>,
    %8 = vector.extract_strided_slice %5 {offsets = [0, 128], sizes = [8, 128], strides = [1, 1]} : vector<8x384xf32> to vector<8x128xf32>
    %9 = math.exp %8 : vector<8x128xf32>
    %c0_7 = arith.constant 0 : index
    %c128 = arith.constant 128 : index
    %10 = vector.load %arg4[%c0_7, %c128] : memref<8x384xf32, #tpu.memory_space<vmem>>, vector<8x128xf32>
    tpu.vector_store %arg4[%c0_7, %c128], %9 {strides = array<i32>} : memref<8x384xf32, #tpu.memory_space<vmem>>, vector<8x128xf32>,
    %11 = vector.extract_strided_slice %5 {offsets = [0, 256], sizes = [8, 128], strides = [1, 1]} : vector<8x384xf32> to vector<8x128xf32>
    %cst_8 = arith.constant dense<0xFF800000> : vector<8xf32>
    %12 = vector.multi_reduction <maximumf>, %11, %cst_8 [1] : vector<8x128xf32> to vector<8xf32>
    %13 = vector.shape_cast %12 : vector<8xf32> to vector<8x1xf32>
    %14 = vector.broadcast %13 : vector<8x1xf32> to vector<8x128xf32>
    %15 = arith.subf %11, %14 : vector<8x128xf32>
    %16 = math.exp %15 : vector<8x128xf32>
    %cst_9 = arith.constant dense<0.000000e+00> : vector<8xf32>
    %17 = vector.multi_reduction <add>, %16, %cst_9 [1] : vector<8x128xf32> to vector<8xf32>
    %18 = vector.shape_cast %17 : vector<8xf32> to vector<8x1xf32>
    %19 = tpu.reciprocal %18 {approx = true} : vector<8x1xf32> -> vector<8x1xf32>
    %20 = vector.broadcast %19 : vector<8x1xf32> to vector<8x128xf32>
    %21 = arith.mulf %16, %20 : vector<8x128xf32>
    %c0_10 = arith.constant 0 : index
    %c256 = arith.constant 256 : index
    %22 = vector.load %arg4[%c0_10, %c256] : memref<8x384xf32, #tpu.memory_space<vmem>>, vector<8x128xf32>
    tpu.vector_store %arg4[%c0_10, %c256], %21 {strides = array<i32>} : memref<8x384xf32, #tpu.memory_space<vmem>>, vector<8x128xf32>,
    return
  }
  func.func @transform_0(%arg0: i32) -> (i32, i32) {
    %c0_i32 = arith.constant 0 : i32
    %c0_i32_0 = arith.constant 0 : i32
    return %arg0, %c0_i32 : i32, i32
  }
  func.func @transform_1(%arg0: i32) -> (i32, i32) {
    %c0_i32 = arith.constant 0 : i32
    %c0_i32_0 = arith.constant 0 : i32
    %c0_i32_1 = arith.constant 0 : i32
    return %c0_i32, %c0_i32_0 : i32, i32
  }
  func.func @transform_2(%arg0: i32) -> (i32, i32) {
    %c0_i32 = arith.constant 0 : i32
    %c0_i32_0 = arith.constant 0 : i32
    %c0_i32_1 = arith.constant 0 : i32
    return %c0_i32, %c0_i32_0 : i32, i32
  }
  func.func @transform_3(%arg0: i32) -> (i32, i32) {
    %c0_i32 = arith.constant 0 : i32
    %c0_i32_0 = arith.constant 0 : i32
    return %arg0, %c0_i32 : i32, i32
  }
}

</mosaic_0001>

<llo_original>
// kernel: mdn_forward.1
$region0: #{mdn_forward.1}
  #allocation0 [shape = 'u32[]', space=smem, size = 0x4, offset = 0x4, fixed_abs, tag = 'smem constant byte address 0x4 - core index']
  #allocation1 [shape = 'u32[144,128]{1,0:T(1,128)}', space=vmem, size = 0x12000, scoped, tag = 'internal scratch']
  %s0 = inlined_call_operand.vmem [shape: bf16[8,32], index: 0, kind: input, shape index: {}]
  %s1 = inlined_call_operand.vmem [shape: bf16[32,384], index: 1, kind: input, shape index: {}]
  %s2 = inlined_call_operand.vmem [shape: f32[1,384], index: 2, kind: input, shape index: {}]
  %s3 = inlined_call_operand.vmem [shape: f32[8,384], index: 3, kind: output, shape index: {}]
  %s4 = sld [smem:[#allocation0]]
  $region22: #{mdn_forward.1} parent=0
    _
  %s6 = ssub.s32 1, %s4
  %s7 = scalar_select 0, %s6, %s4
  // Predicated region
  $region2: #{mdn_forward.1} parent=0 // pred_check
    _
  $region3: #{mdn_forward.1} parent=0 // pred_check_branch
    %9 = sbr.rel (0) target = $region5
  $region4: #{mdn_forward.1} parent=0 // pred_region
    _
  $region5: #{mdn_forward.1} parent=0 // pred_fallthru
    _
  // Predicated region
  $region6: #{mdn_forward.1} parent=0 // pred_check
    _
  $region7: #{mdn_forward.1} parent=0 // pred_check_branch
    %11 = sbr.rel (0) target = $region9
  $region8: #{mdn_forward.1} parent=0 // pred_region
    _
  $region9: #{mdn_forward.1} parent=0 // pred_fallthru
    _
  // Predicated region
  $region10: #{mdn_forward.1} parent=0 // pred_check
    _
  $region11: #{mdn_forward.1} parent=0 // pred_check_branch
    %13 = sbr.rel (0) target = $region13
  $region12: #{mdn_forward.1} parent=0 // pred_region
    _
  $region13: #{mdn_forward.1} parent=0 // pred_fallthru
    _
  %v15 = vld [vmem:[%s0] sm:$0xf]
  %v16 = vld [vmem:[%s1] sm:$0xff]
  %v17 = vld [vmem:[%s1 + $0x8] sm:$0xf]
  %v18 = vld [vmem:[%s1 + $0xc] sm:$0xff]
  %v19 = vld [vmem:[%s1 + $0x14] sm:$0xf]
  %v20 = vld [vmem:[%s1 + $0x18] sm:$0xff]
  %v21 = vld [vmem:[%s1 + $0x20] sm:$0xf]
  %v22 = vld [vmem:[%s1 + $0x24] sm:$0xff]
  %v23 = vld [vmem:[%s1 + $0x2c] sm:$0xf]
  %v24 = vld [vmem:[%s2] sm:$0x7]
  %v26 = vlaneseq
  %v27 = vshrl.u32 %v26, 7
  %v28 = vsub.s32 0, %v27
  %v29 = vrot.slane %v24, %v28
  %v30 = vlaneseq
  %v31 = vshrl.u32 %v30, 7
  %v32 = vsub.s32 1, %v31
  %v33 = vrot.slane %v24, %v32
  %v34 = vlaneseq
  %v35 = vshrl.u32 %v34, 7
  %v36 = vsub.s32 2, %v35
  %v37 = vrot.slane %v24, %v36
  %v49 = vunpack.c.l.b16 %v16
  %v50 = vunpack.c.h.b16 %v16
  %v51 = vunpack.c.l.b16 %v17
  %v52 = vunpack.c.l.b16 %v18
  %v53 = vunpack.c.h.b16 %v18
  %v54 = vunpack.c.l.b16 %v19
  %v55 = vunpack.c.l.b16 %v20
  %v56 = vunpack.c.h.b16 %v20
  %v57 = vunpack.c.l.b16 %v21
  %v58 = vunpack.c.l.b16 %v22
  %v59 = vunpack.c.h.b16 %v22
  %v60 = vunpack.c.l.b16 %v23
  %v61 = vpack.c.b16 %v52, %v49
  %v62 = vpack.c.b16 %v53, %v50
  %v63 = vpack.c.b16 %v54, %v51
  %v64 = vpack.c.b16 %v58, %v55
  %v65 = vpack.c.b16 %v59, %v56
  %v66 = vpack.c.b16 %v60, %v57
  %vm73 = vcmask 261120
  %v75 = vsel %vm73, %v15, 0
  %77 = vmatprep.subr.bf16.mxu0 0
  %78 = vmatpush1.bf16.msra.mxu0 0
  %79 = vmatprep.subr.bf16.mxu0 0
  %80 = vmatpush1.bf16.msra.mxu0 0
  %81 = vmatprep.subr.bf16.mxu0 0
  %82 = vmatpush1.bf16.msra.mxu0 0
  %83 = vmatprep.subr.bf16.mxu0 0
  %84 = vmatpush1.bf16.msra.mxu0 0
  %85 = vmatprep.subr.bf16.mxu0 0
  %86 = vmatpush1.bf16.msra.mxu0 0
  %87 = vmatprep.subr.bf16.mxu0 0
  %88 = vmatpush1.bf16.msra.mxu0 0
  %89 = vmatprep.subr.bf16.mxu0 %v65
  %90 = vmatpush1.bf16.msra.mxu0 %v64
  %91 = vmatprep.subr.bf16.mxu0 %v62
  %92 = vmatpush1.bf16.msra.mxu0 %v61
  %93 = vmatprep.subr.bf16.mxu0 0
  %94 = vmatpush2.bf16.msra.mxu0 0
  %95 = vmatprep.subr.bf16.mxu0 0
  %96 = vmatpush2.bf16.msra.mxu0 0
  %97 = vmatprep.subr.bf16.mxu0 0
  %98 = vmatpush2.bf16.msra.mxu0 0
  %99 = vmatprep.subr.bf16.mxu0 0
  %100 = vmatpush2.bf16.msra.mxu0 0
  %101 = vmatprep.subr.bf16.mxu0 0
  %102 = vmatpush2.bf16.msra.mxu0 0
  %103 = vmatprep.subr.bf16.mxu0 0
  %104 = vmatpush2.bf16.msra.mxu0 0
  %105 = vmatprep.subr.bf16.mxu0 0
  %106 = vmatpush2.bf16.msra.mxu0 0
  %107 = vmatprep.subr.bf16.mxu0 0
  %108 = vmatpush2.bf16.msra.mxu0 0
  %109 = vmatprep.mubr.bf16.mxu0 0
  %110 = vmatmul.mubr.bf16.gmra.mxu0 %v75
  %v111 = vpop.f32.mrf.mxu0
  %v112 = vadd.f32 %v29, %v111
  %v113 = vpop.f32.mrf.mxu0
  %v114 = vadd.f32 %v33, %v113
  %v115 = vpop.f32.mrf.mxu0
  %v116 = vpop.f32.mrf.mxu0
  %117 = vdwg.mxu0
  %118 = vmatprep.subr.bf16.mxu0 0
  %119 = vmatpush1.bf16.msra.mxu0 0
  %120 = vmatprep.subr.bf16.mxu0 0
  %121 = vmatpush1.bf16.msra.mxu0 0
  %122 = vmatprep.subr.bf16.mxu0 0
  %123 = vmatpush1.bf16.msra.mxu0 0
  %124 = vmatprep.subr.bf16.mxu0 0
  %125 = vmatpush1.bf16.msra.mxu0 0
  %126 = vmatprep.subr.bf16.mxu0 0
  %127 = vmatpush1.bf16.msra.mxu0 0
  %128 = vmatprep.subr.bf16.mxu0 0
  %129 = vmatpush1.bf16.msra.mxu0 0
  %130 = vmatprep.subr.bf16.mxu0 0
  %131 = vmatpush1.bf16.msra.mxu0 %v66
  %132 = vmatprep.subr.bf16.mxu0 0
  %133 = vmatpush1.bf16.msra.mxu0 %v63
  %134 = vmatprep.subr.bf16.mxu0 0
  %135 = vmatpush2.bf16.msra.mxu0 0
  %136 = vmatprep.subr.bf16.mxu0 0
  %137 = vmatpush2.bf16.msra.mxu0 0
  %138 = vmatprep.subr.bf16.mxu0 0
  %139 = vmatpush2.bf16.msra.mxu0 0
  %140 = vmatprep.subr.bf16.mxu0 0
  %141 = vmatpush2.bf16.msra.mxu0 0
  %142 = vmatprep.subr.bf16.mxu0 0
  %143 = vmatpush2.bf16.msra.mxu0 0
  %144 = vmatprep.subr.bf16.mxu0 0
  %145 = vmatpush2.bf16.msra.mxu0 0
  %146 = vmatprep.subr.bf16.mxu0 0
  %147 = vmatpush2.bf16.msra.mxu0 0
  %148 = vmatprep.subr.bf16.mxu0 0
  %149 = vmatpush2.bf16.msra.mxu0 0
  %150 = vmatprep.mubr.bf16.mxu0 0
  %151 = vmatmul.mubr.bf16.gmra.mxu0 %v75
  %v152 = vpop.f32.mrf.mxu0
  %v153 = vadd.f32 %v37, %v152
  %v154 = vpop.f32.mrf.mxu0
  %v155 = vpop.f32.mrf.mxu0
  %v156 = vpop.f32.mrf.mxu0
  %157 = vdwg.mxu0
  %158 = vst [vmem:[%s3] sm:$0xff] %v112
  %v159 = vmul.f32 %v114, 1.442695
  %v160 = vpow.pop %v159
  %161 = vst [vmem:[%s3 + $0x8] sm:$0xff] %v160
  %162 = vmax.xlane.f32.xlu0 %v153
  %v163 = vpop.xlane.xlu0 %162
  %v164 = vsub.f32 %v153, %v163
  %v165 = vmul.f32 %v164, 1.442695
  %v166 = vpow.pop %v165
  %167 = vadd.xlane.f32.xlu0 %v166
  %v168 = vpop.xlane.xlu0 %167
  %v169 = vrcp.pop %v168
  %v170 = vmul.f32 %v166, %v169
  %171 = vst [vmem:[%s3 + $0x10] sm:$0xff] %v170
  // Predicated region
  $region14: #{mdn_forward.1} parent=0 // pred_check
    _
  $region15: #{mdn_forward.1} parent=0 // pred_check_branch
    %173 = sbr.rel (0) target = $region17
  $region16: #{mdn_forward.1} parent=0 // pred_region
    _
  $region17: #{mdn_forward.1} parent=0 // pred_fallthru
    _
  // Predicated region
  $region18: #{mdn_forward.1} parent=0 // pred_check
    _
  $region19: #{mdn_forward.1} parent=0 // pred_check_branch
    %175 = sbr.rel (0) target = $region21
  $region20: #{mdn_forward.1} parent=0 // pred_region
    _
  $region21: #{mdn_forward.1} parent=0 // pred_fallthru
    _

</llo_original>
